<compile_context>
chip_gen: v7x
topology: tpu7x:2x2x1
jax: 0.10.0
libtpu: 0.0.40
codegen_flags: <defaults>
</compile_context>

<pallas_src>
import jax
import jax.numpy as jnp
from jax.experimental import pallas as pl
from jax.experimental.pallas import tpu as pltpu


def _freq_shift_kernel(shift_ref, x_ref, o_ref):
    # shift_ref: (1,) int32 in SMEM (scalar prefetch)
    # x_ref / o_ref: (Bb, F, Tt) VMEM blocks; F = sublane axis, Tt = lane axis.
    F = x_ref.shape[1]
    s = shift_ref[0] % F  # jnp floor-mod maps negative shifts into [0, F)
    # pltpu.roll follows the jnp.roll / torch.roll convention:
    #   out[.., f, ..] = in[.., (f - s) mod F, ..]   (verified by self-test)
    o_ref[...] = pltpu.roll(x_ref[...], s, axis=1)


def _choose_tiling(B, F, T, itemsize, target_block_bytes):
    """Pick (Bb, Tt) block dims: lane-aligned, <= target bytes, >=2 grid steps."""
    # Lane-aligned time tile: keep full T when small or ragged, otherwise halve
    # while the tile stays a multiple of 128 until an (1, F, Tt) slab fits.
    Tt = T
    if T % 128 == 0:
        while F * Tt * itemsize > target_block_bytes and Tt % 256 == 0:
            Tt //= 2

    # Batch sub-block: amortize per-grid-step overhead, bounded by the budget.
    slab_bytes = F * Tt * itemsize
    Bb = int(max(1, min(B, target_block_bytes // max(slab_bytes, 1))))
    while B % Bb != 0:  # keep blocks exact (no ragged tail)
        Bb -= 1

    # Guarantee >= 2 grid steps along a parallel axis when possible: v7x has
    # two TensorCores and a (1, 1) grid leaves one idle and kills pipelining.
    if (B // Bb) * (T // Tt) < 2:
        if B >= 2:
            Bb = B // 2
            while B % Bb != 0:
                Bb -= 1
        elif T % 256 == 0:
            Tt //= 2
    return Bb, Tt


def freq_shift(x, shift, *, training=True, target_block_bytes=4 << 20,
               donate_x=False):
    """Pallas FreqShift forward.

    x:     (B, F, T) array.  For the roll to stay a pure XLU sublane rotate,
           F should be a multiple of the sublane pack (8 for f32, 16 for bf16,
           32 for int8) and T a multiple of 128 (lane-dense stores); other
           shapes stay correct but may pay relayout cost.
    shift: int32 scalar (the host-side random draw, like torch's .item()).
    """
    if not training:  # eval mode: identity, no kernel needed
        return x

    B, F, T = x.shape
    itemsize = jnp.dtype(x.dtype).itemsize

    Bb, Tt = _choose_tiling(B, F, T, itemsize, target_block_bytes)
    block_bytes = Bb * F * Tt * itemsize

    # Pipelined footprint ~ 2 arrays (in + out) x 2 buffers x block.  Raise the
    # scoped-VMEM limit to cover it (plus margin) so v5e's 16 MiB default and
    # the ragged-T full-slab fallback never silently fail or degrade; cap at
    # v7x's 64 MiB physical VMEM per TensorCore.
    vmem_limit = int(min(max(4 * block_bytes + (2 << 20), 16 << 20), 64 << 20))

    grid = (B // Bb, T // Tt)
    shift_arr = jnp.asarray(shift, dtype=jnp.int32).reshape((1,))

    # x is arg index 1 (after the scalar-prefetch arg); aliasing it to output 0
    # is safe because each output tile reads only its fully-loaded input tile.
    io_aliases = {1: 0} if donate_x else {}

    return pl.pallas_call(
        _freq_shift_kernel,
        out_shape=jax.ShapeDtypeStruct((B, F, T), x.dtype),
        grid_spec=pltpu.PrefetchScalarGridSpec(
            num_scalar_prefetch=1,
            grid=grid,
            in_specs=[pl.BlockSpec((Bb, F, Tt), lambda b, t, shift: (b, 0, t))],
            out_specs=pl.BlockSpec((Bb, F, Tt), lambda b, t, shift: (b, 0, t)),
        ),
        compiler_params=pltpu.CompilerParams(
            dimension_semantics=("parallel", "parallel"),
            vmem_limit_bytes=vmem_limit),
        cost_estimate=pl.CostEstimate(
            flops=0, transcendentals=0,
            bytes_accessed=2 * B * F * T * itemsize),
        input_output_aliases=io_aliases,
    )(shift_arr, x)


if __name__ == "__main__":
    key = jax.random.PRNGKey(0)
    k_x, k_shift = jax.random.split(key)

    B, F, T = 2, 64, 128
    x = jax.random.normal(k_x, (B, F, T), dtype=jnp.float32)

    # FreqShift(mean, std): one normal draw per forward call, truncated toward
    # zero like torch's .int().  The draw itself is host/wrapper-side, exactly
    # like the torch module's .item().
    mean, std = 0.0, 4.0
    shift_f = mean + std * jax.random.normal(k_shift, ())
    shift = shift_f.astype(jnp.int32)  # trunc-toward-zero, matches torch .int()

    y = jax.block_until_ready(freq_shift(x, shift, training=True))
    expected = jnp.roll(x, int(shift), axis=1)
    assert jnp.array_equal(y, expected), "mismatch vs roll reference"

    # explicit negative shift exercises the floor-mod wrap path
    y_neg = jax.block_until_ready(freq_shift(x, jnp.int32(-5), training=True))
    assert jnp.array_equal(y_neg, jnp.roll(x, -5, axis=1)), "negative-shift mismatch"

    # bf16 path (sublane-packed dtype): F=64 is a multiple of 16, stays aligned
    x_bf16 = x.astype(jnp.bfloat16)
    y_bf16 = jax.block_until_ready(freq_shift(x_bf16, jnp.int32(7), training=True))
    assert jnp.array_equal(y_bf16, jnp.roll(x_bf16, 7, axis=1)), "bf16 mismatch"

    # eval mode is the identity
    y_eval = jax.block_until_ready(freq_shift(x, shift, training=False))
    assert jnp.array_equal(y_eval, x)

    print("KERNEL_OK")
</pallas_src>

<mosaic_0001>
module attributes {stable_mosaic.version = 11 : i64} {
  func.func @_freq_shift_kernel(%arg0: i32, %arg1: i32, %arg2: memref<1xi32, #tpu.memory_space<smem>>, %arg3: memref<1x64x128xf32, #tpu.memory_space<vmem>>, %arg4: memref<1x64x128xf32, #tpu.memory_space<vmem>>) attributes {dimension_semantics = [#tpu.dimension_semantics<parallel>, #tpu.dimension_semantics<parallel>], iteration_bounds = array<i64: 2, 1>, scalar_prefetch = 1 : i64, scratch_operands = 0 : i64, tpu.core_type = #tpu.core_type<tc>, window_params = [{transform_indices = @transform_0, window_bounds = array<i64: 1, 64, 128>}, {transform_indices = @transform_1, window_bounds = array<i64: 1, 64, 128>}]} {
    %c0 = arith.constant 0 : index
    %0 = memref.load %arg2[%c0] : memref<1xi32, #tpu.memory_space<smem>>
    %c64_i32 = arith.constant 64 : i32
    %c0_i32 = arith.constant 0 : i32
    %1 = arith.cmpi eq, %c64_i32, %c0_i32 : i32
    %c1_i32 = arith.constant 1 : i32
    %2 = arith.select %1, %c1_i32, %c64_i32 : i32
    %3 = arith.remsi %0, %2 : i32
    %c0_i32_0 = arith.constant 0 : i32
    %4 = arith.cmpi ne, %3, %c0_i32_0 : i32
    %c0_i32_1 = arith.constant 0 : i32
    %5 = arith.cmpi slt, %3, %c0_i32_1 : i32
    %c0_i32_2 = arith.constant 0 : i32
    %6 = arith.cmpi slt, %2, %c0_i32_2 : i32
    %7 = arith.xori %5, %6 : i1
    %8 = arith.andi %7, %4 : i1
    %9 = arith.addi %3, %2 : i32
    %10 = arith.select %8, %9, %3 : i32
    %c0_3 = arith.constant 0 : index
    %c0_4 = arith.constant 0 : index
    %c0_5 = arith.constant 0 : index
    %11 = vector.load %arg3[%c0_3, %c0_4, %c0_5] : memref<1x64x128xf32, #tpu.memory_space<vmem>>, vector<1x64x128xf32>
    %12 = tpu.dynamic_rotate %11 by %10 dim 1 : vector<1x64x128xf32>, i32 -> vector<1x64x128xf32>
    %c0_6 = arith.constant 0 : index
    %c0_7 = arith.constant 0 : index
    %c0_8 = arith.constant 0 : index
    %13 = vector.load %arg4[%c0_6, %c0_7, %c0_8] : memref<1x64x128xf32, #tpu.memory_space<vmem>>, vector<1x64x128xf32>
    tpu.vector_store %arg4[%c0_6, %c0_7, %c0_8], %12 {strides = array<i32>} : memref<1x64x128xf32, #tpu.memory_space<vmem>>, vector<1x64x128xf32>,
    return
  }
  func.func @transform_0(%arg0: i32, %arg1: i32, %arg2: memref<1xi32, #tpu.memory_space<smem>>) -> (i32, i32, i32) {
    %c0_i32 = arith.constant 0 : i32
    %c0_i32_0 = arith.constant 0 : i32
    return %arg0, %c0_i32, %arg1 : i32, i32, i32
  }
  func.func @transform_1(%arg0: i32, %arg1: i32, %arg2: memref<1xi32, #tpu.memory_space<smem>>) -> (i32, i32, i32) {
    %c0_i32 = arith.constant 0 : i32
    %c0_i32_0 = arith.constant 0 : i32
    return %arg0, %c0_i32, %arg1 : i32, i32, i32
  }
}

</mosaic_0001>

<llo_original>
// kernel: tpu_custom_call.1
$region0: #{tpu_custom_call.1}
  #allocation0 [shape = 'u32[]', space=smem, size = 0x4, offset = 0x4, fixed_abs, tag = 'smem constant byte address 0x4 - core index']
  #allocation1 [shape = 'u32[144,128]{1,0:T(1,128)}', space=vmem, size = 0x12000, scoped, tag = 'internal scratch']
  #allocation2 [shape = 's32[1]{0}', space=sflag, size = 0x4, scoped, tag = 'scoped memory for tpu_custom_call.1']
  #allocation3 [shape = 's32[1]{0:T(128)S(6)}', space=smem, size = 0x200, scoped, tag = 'prefetched SMEM operand 0']
  %s0 = inlined_call_operand.<no memory space> [shape: s32[1], index: 0, kind: input, shape index: {}]
  %s1 = inlined_call_operand.hbm [shape: f32[2,64,128], index: 1, kind: input, shape index: {}]
  %s2 = inlined_call_operand.hbm [shape: f32[2,64,128], index: 2, kind: output, shape index: {}]
  %s3 = sld [smem:[#allocation0]]
  $region41: #{tpu_custom_call.1} parent=0
    _
  %s5 = ssub.s32 1, %s3
  %s6 = scalar_select 0, %s5, %s3
  %7 = sst [smem:[#allocation3]] %s0
  $region1: #{tpu_custom_call.1} parent=0
    #allocation4 [shape = 'u8[65536]{0}', space=vmem, size = 0x10000, scoped, tag = 'input window, operand 1']
    #allocation5 [shape = 's32[2]{0}', space=sflag, size = 0x8, scoped, tag = 'scoped memory for tpu_custom_call.1']
    #allocation6 [shape = 's32[2]{0}', space=sflag, size = 0x8, scoped, tag = 'scoped memory for tpu_custom_call.1']
    #allocation7 [shape = 'u8[65536]{0}', space=vmem, size = 0x10000, scoped, tag = 'output window, operand 0']
    %8 = vsyncpa [#allocation5], 0
    %s9 = scalar_lea.sflag [#allocation5], 1
    %10 = vsyncpa %s9, 0
    %11 = vsyncpa [#allocation6], 0
    %s12 = scalar_lea.sflag [#allocation6], 1
    %13 = vsyncpa %s12, 0
    loop: start=0, step=1, limit=4
    $region2: #{tpu_custom_call.1} parent=1 // loop_pre_header
      _
    $region3: #{tpu_custom_call.1} parent=1 // loop_header
      %s15 = sphi 0, %s19
      %p16 = scmp.ge.s32.totalorder %s15, 4
      %s22 = sphi 0, %s34
      %s23 = sphi 0, %s30
      %s24 = sphi 0, %s22
      %s25 = sphi 0, %s23
      %s26 = sphi 0, %s24
      %s27 = sphi 0, %s25
      %s39 = sphi 0, %s41
      %s42 = sphi 0, %s39
      %s43 = sphi 0, %s42
      %s59 = sphi 0, %s43
      %s67 = sphi 0, %s69
      %s70 = sphi 0, %s67
      %s71 = sphi 0, %s70
      %s87 = sphi 0, %s71
    $region4: #{tpu_custom_call.1} parent=1 // loop_header_branch
      %18 = sbr.rel (%p16) target = $region8
    $region5: #{tpu_custom_call.1} parent=1 // loop_body
      %s20 = ssub.s32 %s15, 1
      %s21 = ssub.s32 %s15, 2
      %s28 = sadd.s32 1, %s23
      %p29 = scmp.ge.s32.totalorder %s28, 1
      %s30 = scalar_select %p29, 0, %s28
      %s31 = sadd.s32 1, %s22
      %s32 = scalar_select %p29, %s31, %s22
      %p33 = scmp.ge.s32.totalorder %s32, 2
      %s34 = scalar_select %p33, 0, %s32
      %s35 = ssub.s32 %s22, %s34
      %s36 = ssub.s32 %s23, %s30
      %s37 = sor.u32 %s35, %s36
      %p38 = scmp.eq.s32.totalorder %s37, 0
      %s40 = sadd.s32 %s39, 1
      %s41 = scalar_select %p38, %s39, %s40
      %p44 = pneg %p38
      %p45 = scmp.eq.s32.totalorder %s15, 1
      %p46 = por %p44, %p45
      %p47 = scmp.ne.s32.totalorder %s39, %s42
      %p48 = scmp.eq.s32.totalorder %s15, 0
      %p49 = por %p47, %p48
      %p50 = scmp.ne.s32.totalorder %s39, %s42
      %p51 = scmp.eq.s32.totalorder %s20, 1
      %p52 = por %p50, %p51
      %p53 = scmp.ne.s32.totalorder %s42, %s43
      %p54 = scmp.eq.s32.totalorder %s20, 0
      %p55 = por %p53, %p54
      %p56 = scmp.ne.s32.totalorder %s42, %s43
      %p57 = scmp.eq.s32.totalorder %s21, 1
      %p58 = por %p56, %p57
      %p60 = scmp.ne.s32.totalorder %s43, %s59
      %p61 = scmp.eq.s32.totalorder %s21, 0
      %p62 = por %p60, %p61
      %s63 = ssub.s32 %s22, %s34
      %s64 = ssub.s32 %s23, %s30
      %s65 = sor.u32 %s63, %s64
      %p66 = scmp.eq.s32.totalorder %s65, 0
      %s68 = sadd.s32 %s67, 1
      %s69 = scalar_select %p66, %s67, %s68
      %p72 = pneg %p66
      %p73 = scmp.eq.s32.totalorder %s15, 1
      %p74 = por %p72, %p73
      %p75 = scmp.ne.s32.totalorder %s67, %s70
      %p76 = scmp.eq.s32.totalorder %s15, 0
      %p77 = por %p75, %p76
      %p78 = scmp.ne.s32.totalorder %s67, %s70
      %p79 = scmp.eq.s32.totalorder %s20, 1
      %p80 = por %p78, %p79
      %p81 = scmp.ne.s32.totalorder %s70, %s71
      %p82 = scmp.eq.s32.totalorder %s20, 0
      %p83 = por %p81, %p82
      %p84 = scmp.ne.s32.totalorder %s70, %s71
      %p85 = scmp.eq.s32.totalorder %s21, 1
      %p86 = por %p84, %p85
      %p88 = scmp.ne.s32.totalorder %s71, %s87
      %p89 = scmp.eq.s32.totalorder %s21, 0
      %p90 = por %p88, %p89
      %p91 = scmp.le.s32.totalorder 1, %s15
      %p92 = scmp.lt.s32.totalorder %s15, 3
      %p93 = pnand %p91, %p92
      %p94 = pneg %p93
      // Predicated region
      $region9: #{tpu_custom_call.1} parent=5 // pred_check
        _
      $region10: #{tpu_custom_call.1} parent=5 // pred_check_branch
        %96 = sbr.rel (%p93) target = $region12
      $region11: #{tpu_custom_call.1} parent=5 // pred_region
        %s97 = ssub.s32 %s15, 1
      $region12: #{tpu_custom_call.1} parent=5 // pred_fallthru
        _
      %p98 = scmp.lt.s32.totalorder %s15, 2
      // Predicated region
      $region13: #{tpu_custom_call.1} parent=5 // pred_check
        %p99 = pneg %p98
      $region14: #{tpu_custom_call.1} parent=5 // pred_check_branch
        %101 = sbr.rel (%p99) target = $region16
      $region15: #{tpu_custom_call.1} parent=5 // pred_region
        // Predicated region
        $region17: #{tpu_custom_call.1} parent=15 // pred_check
          %p102 = pneg %p49
        $region18: #{tpu_custom_call.1} parent=15 // pred_check_branch
          %104 = sbr.rel (%p102) target = $region20
        $region19: #{tpu_custom_call.1} parent=15 // pred_region
          %s105 = sand.u32 %s39, 1
          %s106 = scalar_lea.sflag [#allocation5], %s105
          %s107 = sand.u32 %s39, 1
          %s108 = smul.addr %s107, 64
          %s109 = scalar_lea.vmem [#allocation4], %s108
          %s111 = ssub.s32 1024, 1024
          %112 = vsyncadd %s106, %s111
          %s113 = smul.addr %s22, 8
          %s114 = sadd.s32 %s23, %s113
          %s115 = smul.addr %s114, 128
          %s116 = scalar_lea.hbm %s1, %s115
          %s117 = sshll.u32 %s109, 4
          %s118 = int_to_ptr.vmem [resolvable:$true] %s117
          %123 = dma.hbm_to_vmem [thread:$0]  %s116, 1024, %s118, %s106, 128, 128, 8
        $region20: #{tpu_custom_call.1} parent=15 // pred_fallthru
          _
      $region16: #{tpu_custom_call.1} parent=5 // pred_fallthru
        _
      %p124 = scmp.le.s32.totalorder 1, %s15
      %p125 = scmp.lt.s32.totalorder %s15, 3
      %p126 = pnand %p124, %p125
      %p127 = pneg %p126
      // Predicated region
      $region21: #{tpu_custom_call.1} parent=5 // pred_check
        _
      $region22: #{tpu_custom_call.1} parent=5 // pred_check_branch
        %129 = sbr.rel (%p126) target = $region24
      $region23: #{tpu_custom_call.1} parent=5 // pred_region
        %s130 = ssub.s32 %s15, 1
        %s131 = sand.u32 %s42, 1
        %s132 = scalar_lea.sflag [#allocation5], %s131
        %s133 = sand.u32 %s42, 1
        %s134 = smul.addr %s133, 64
        %s135 = scalar_lea.vmem [#allocation4], %s134
        // Predicated region
        $region25: #{tpu_custom_call.1} parent=23 // pred_check
          %p136 = pneg %p55
        $region26: #{tpu_custom_call.1} parent=23 // pred_check_branch
          %138 = sbr.rel (%p136) target = $region28
        $region27: #{tpu_custom_call.1} parent=23 // pred_region
          %139 = dma.done %s132, 1024
        $region28: #{tpu_custom_call.1} parent=23 // pred_fallthru
          _
        %s140 = sand.u32 %s42, 1
        %s141 = scalar_lea.sflag [#allocation5], %s140
        %s142 = sand.u32 %s42, 1
        %s143 = smul.addr %s142, 64
        %s144 = scalar_lea.vmem [#allocation4], %s143
        %p145 = pneg %p55
        %p146 = pneg %p52
        %p147 = pneg %p83
        %p148 = pneg %p80
        %s149 = sand.u32 %s70, 1
        %s150 = scalar_lea.sflag [#allocation6], %s149
        %s151 = sand.u32 %s70, 1
        %s152 = smul.addr %s151, 64
        %s153 = scalar_lea.vmem [#allocation7], %s152
        %s154 = sld [smem:[#allocation3]]
        %p155 = scmp.lt.s32.totalorder %s154, 0
        %s156 = ssub.s32 0, %s154
        %s157 = scalar_select %p155, %s156, %s154
        %s158 = sand.u32 %s157, 63
        %s159 = ssub.s32 0, %s158
        %s160 = scalar_select %p155, %s159, %s158
        %p161 = scmp.ne.s32.totalorder %s160, 0
        %p162 = scmp.lt.s32.totalorder %s160, 0
        %p163 = pnand %p162, %p161
        %p164 = pneg %p163
        %s165 = sadd.s32 %s160, 64
        %s166 = scalar_select %p164, %s165, %s160
        %v167 = vld [vmem:[%s135] sm:$0xff]
        %v168 = vld [vmem:[%s135 + $0x8] sm:$0xff]
        %v169 = vld [vmem:[%s135 + $0x10] sm:$0xff]
        %v170 = vld [vmem:[%s135 + $0x18] sm:$0xff]
        %v171 = vld [vmem:[%s135 + $0x20] sm:$0xff]
        %v172 = vld [vmem:[%s135 + $0x28] sm:$0xff]
        %v173 = vld [vmem:[%s135 + $0x30] sm:$0xff]
        %v174 = vld [vmem:[%s135 + $0x38] sm:$0xff]
        %s175 = sand.u32 %s166, 63
        %s176 = sand.u32 %s175, 7
        %s177 = sshrl.u32 %s175, 3
        %s178 = ssub.s32 8, %s176
        %v179 = vstv %s178
        %v180 = vrot.slane %v167, %v179
        %v181 = vstv %s178
        %v182 = vrot.slane %v168, %v181
        %v183 = vstv %s178
        %v184 = vrot.slane %v169, %v183
        %v185 = vstv %s178
        %v186 = vrot.slane %v170, %v185
        %v187 = vstv %s178
        %v188 = vrot.slane %v171, %v187
        %v189 = vstv %s178
        %v190 = vrot.slane %v172, %v189
        %v191 = vstv %s178
        %v192 = vrot.slane %v173, %v191
        %v193 = vstv %s178
        %v194 = vrot.slane %v174, %v193
        %v195 = vstv %s176
        %v196 = vlaneseq
        %v197 = vshrl.u32 %v196, 7
        %vm198 = vcmp.lt.s32.totalorder %v197, %v195
        %v199 = vsel %vm198, %v192, %v194
        %v200 = vsel %vm198, %v190, %v192
        %v201 = vsel %vm198, %v188, %v190
        %v202 = vsel %vm198, %v186, %v188
        %v203 = vsel %vm198, %v184, %v186
        %v204 = vsel %vm198, %v182, %v184
        %v205 = vsel %vm198, %v180, %v182
        %v206 = vsel %vm198, %v194, %v180
        %s207 = sand.u32 %s177, 1
        %v208 = vstv %s207
        %vm209 = vcmp.ne.s32.totalorder %v208, 0
        %v210 = vsel %vm209, %v199, %v206
        %v211 = vsel %vm209, %v206, %v205
        %v212 = vsel %vm209, %v205, %v204
        %v213 = vsel %vm209, %v204, %v203
        %v214 = vsel %vm209, %v203, %v202
        %v215 = vsel %vm209, %v202, %v201
        %v216 = vsel %vm209, %v201, %v200
        %v217 = vsel %vm209, %v200, %v199
        %s218 = sand.u32 %s177, 2
        %v219 = vstv %s218
        %vm220 = vcmp.ne.s32.totalorder %v219, 0
        %v221 = vsel %vm220, %v216, %v210
        %v222 = vsel %vm220, %v217, %v211
        %v223 = vsel %vm220, %v210, %v212
        %v224 = vsel %vm220, %v211, %v213
        %v225 = vsel %vm220, %v212, %v214
        %v226 = vsel %vm220, %v213, %v215
        %v227 = vsel %vm220, %v214, %v216
        %v228 = vsel %vm220, %v215, %v217
        %s229 = sand.u32 %s177, 4
        %v230 = vstv %s229
        %vm231 = vcmp.ne.s32.totalorder %v230, 0
        %v232 = vsel %vm231, %v225, %v221
        %v233 = vsel %vm231, %v226, %v222
        %v234 = vsel %vm231, %v227, %v223
        %v235 = vsel %vm231, %v228, %v224
        %v236 = vsel %vm231, %v221, %v225
        %v237 = vsel %vm231, %v222, %v226
        %v238 = vsel %vm231, %v223, %v227
        %v239 = vsel %vm231, %v224, %v228
        %240 = vst [vmem:[%s153] sm:$0xff] %v232
        %241 = vst [vmem:[%s153 + $0x8] sm:$0xff] %v233
        %242 = vst [vmem:[%s153 + $0x10] sm:$0xff] %v234
        %243 = vst [vmem:[%s153 + $0x18] sm:$0xff] %v235
        %244 = vst [vmem:[%s153 + $0x20] sm:$0xff] %v236
        %245 = vst [vmem:[%s153 + $0x28] sm:$0xff] %v237
        %246 = vst [vmem:[%s153 + $0x30] sm:$0xff] %v238
        %247 = vst [vmem:[%s153 + $0x38] sm:$0xff] %v239
        %s248 = sand.u32 %s70, 1
        %s249 = scalar_lea.sflag [#allocation6], %s248
        %s250 = sand.u32 %s70, 1
        %s251 = smul.addr %s250, 64
        %s252 = scalar_lea.vmem [#allocation7], %s251
        // Predicated region
        $region29: #{tpu_custom_call.1} parent=23 // pred_check
          %p253 = pneg %p80
        $region30: #{tpu_custom_call.1} parent=23 // pred_check_branch
          %255 = sbr.rel (%p253) target = $region32
        $region31: #{tpu_custom_call.1} parent=23 // pred_region
          %s257 = ssub.s32 1024, 1024
          %258 = vsyncadd %s249, %s257
          %s259 = smul.addr %s24, 8
          %s260 = sadd.s32 %s25, %s259
          %s261 = smul.addr %s260, 128
          %s262 = scalar_lea.hbm %s2, %s261
          %s263 = sshll.u32 %s252, 4
          %s264 = int_to_ptr.vmem [resolvable:$true] %s263
          %269 = dma.vmem_to_hbm [thread:$0]  %s264, 1024, %s262, %s249, 128, 128, 8
        $region32: #{tpu_custom_call.1} parent=23 // pred_fallthru
          _
      $region24: #{tpu_custom_call.1} parent=5 // pred_fallthru
        _
      %p270 = scmp.le.s32.totalorder 2, %s15
      // Predicated region
      $region33: #{tpu_custom_call.1} parent=5 // pred_check
        %p271 = pneg %p270
      $region34: #{tpu_custom_call.1} parent=5 // pred_check_branch
        %273 = sbr.rel (%p271) target = $region36
      $region35: #{tpu_custom_call.1} parent=5 // pred_region
        %s274 = ssub.s32 %s15, 2
        // Predicated region
        $region37: #{tpu_custom_call.1} parent=35 // pred_check
          %p275 = pneg %p86
        $region38: #{tpu_custom_call.1} parent=35 // pred_check_branch
          %277 = sbr.rel (%p275) target = $region40
        $region39: #{tpu_custom_call.1} parent=35 // pred_region
          %s278 = sand.u32 %s71, 1
          %s279 = scalar_lea.sflag [#allocation6], %s278
          %s280 = sand.u32 %s71, 1
          %s281 = smul.addr %s280, 64
          %s282 = scalar_lea.vmem [#allocation7], %s281
          %283 = dma.done %s279, 1024
        $region40: #{tpu_custom_call.1} parent=35 // pred_fallthru
          _
      $region36: #{tpu_custom_call.1} parent=5 // pred_fallthru
        _
    $region6: #{tpu_custom_call.1} parent=1 // loop_footer
      %s19 = sadd.s32 1, %s15
    $region7: #{tpu_custom_call.1} parent=1 // loop_footer_branch
      %14 = sbr.rel target = $region3
    $region8: #{tpu_custom_call.1} parent=1 // loop_exit
      _
    %284 = vsyncpa [#allocation5], 1
    %s285 = scalar_lea.sflag [#allocation5], 1
    %286 = vsyncpa %s285, 1
    %287 = vsyncpa [#allocation6], 1
    %s288 = scalar_lea.sflag [#allocation6], 1
    %289 = vsyncpa %s288, 1

</llo_original>
